<compile_context>
chip_gen: v7x
topology: tpu7x:2x2x1
jax: 0.10.0
libtpu: 0.0.40
codegen_flags: <defaults>
</compile_context>

<pallas_src>
import math

import jax
import jax.numpy as jnp
from jax import lax
from jax.experimental import pallas as pl
from jax.experimental.pallas import tpu as pltpu


def _round_up(x, m):
    return ((x + m - 1) // m) * m


def make_lru_kernel(Tc, S_pad, F_out_pad, offsets):
    """Per-(batch, time-chunk) LRU kernel; static shapes closed over."""
    TWO_S = 2 * S_pad

    def kernel(x_ref, w_x_ref, w_out_ref, lam_ref, pow_ref, o_ref,
               hw_ref, carry_ref):
        # (1) One fused MXU pass over x: [u_re | u_im | D @ x] (f32 accumulate).
        hw_ref[...] = jnp.dot(x_ref[...], w_x_ref[...],
                              preferred_element_type=jnp.float32)

        # (2) Hillis–Steele scan within the chunk: h_t = Lambda*h_{t-1} + u_t.
        #     Swap-free split re/im lane halves; rows < offset are unchanged.
        for k, off in enumerate(offsets):
            a = lam_ref[pl.ds(k, 1), 0:S_pad]          # Re(Lambda^off)  [1,S_pad]
            b = lam_ref[pl.ds(k, 1), S_pad:TWO_S]      # Im(Lambda^off)
            if off % 8 == 0:
                # Sublane-aligned: in-place update of rows [off, Tc) only.
                n = Tc - off
                s_re = hw_ref[pl.ds(0, n), 0:S_pad]
                s_im = hw_ref[pl.ds(0, n), S_pad:TWO_S]
                c_re = hw_ref[pl.ds(off, n), 0:S_pad]
                c_im = hw_ref[pl.ds(off, n), S_pad:TWO_S]
                hw_ref[pl.ds(off, n), 0:TWO_S] = jnp.concatenate(
                    [c_re + a * s_re - b * s_im,
                     c_im + a * s_im + b * s_re], axis=1)
            else:
                # Offsets 1/2/4: zero-prefix shift, full-slab aligned store.
                h_re = hw_ref[:, 0:S_pad]
                h_im = hw_ref[:, S_pad:TWO_S]
                z = jnp.zeros((off, S_pad), jnp.float32)
                s_re = jnp.concatenate([z, h_re[:Tc - off, :]], axis=0)
                s_im = jnp.concatenate([z, h_im[:Tc - off, :]], axis=0)
                hw_ref[:, 0:TWO_S] = jnp.concatenate(
                    [h_re + a * s_re - b * s_im,
                     h_im + a * s_im + b * s_re], axis=1)

        # (3) Fold in the carried state of the previous chunk:
        #     h_t += Lambda^(t+1) * carry   (skipped for the first chunk).
        @pl.when(pl.program_id(1) > 0)
        def _():
            cr = carry_ref[:, 0:S_pad]
            ci = carry_ref[:, S_pad:TWO_S]
            pr = pow_ref[:, 0:S_pad]
            pi = pow_ref[:, S_pad:TWO_S]
            h_re = hw_ref[:, 0:S_pad]
            h_im = hw_ref[:, S_pad:TWO_S]
            hw_ref[:, 0:TWO_S] = jnp.concatenate(
                [h_re + pr * cr - pi * ci,
                 h_im + pi * cr + pr * ci], axis=1)

        # (4) Save the chunk-final state for the next chunk of this sequence.
        carry_ref[...] = hw_ref[pl.ds(Tc - 1, 1), 0:TWO_S]

        # (5) y = Re(C @ h) + D @ x  (D-path already sits in hw's tail lanes).
        h_bf = hw_ref[:, 0:TWO_S].astype(jnp.bfloat16)
        y = (jnp.dot(h_bf, w_out_ref[...], preferred_element_type=jnp.float32)
             + hw_ref[:, TWO_S:])
        o_ref[...] = y.astype(o_ref.dtype)

    return kernel


def lru_forward(x, params, *, time_chunk=256):
    """x: [batch, seq, in_features] float32 -> [batch, seq, out_features] float32."""
    B, T, F_in = x.shape
    S = params["nu_log"].shape[0]
    F_out = params["D"].shape[0]

    f32, bf16 = jnp.float32, jnp.bfloat16
    S_pad = _round_up(S, 128)
    F_in_pad = _round_up(F_in, 128)
    F_out_pad = _round_up(F_out, 128)
    TWO_S = 2 * S_pad
    W_X = TWO_S + F_out_pad

    # Time chunk: power of two, >= 8, <= time_chunk.
    cap = 1 << max(3, int(time_chunk).bit_length() - 1)
    Tc = min(1 << max(3, (max(T, 1) - 1).bit_length()), cap)
    T_pad = _round_up(T, Tc)
    num_chunks = T_pad // Tc
    offsets = [1 << k for k in range(Tc.bit_length() - 1)]
    P = len(offsets)

    # Lambda / gamma from the log-parameters.
    lam_mod = jnp.exp(-jnp.exp(params["nu_log"])).astype(f32)
    theta = jnp.exp(params["theta_log"]).astype(f32)
    gamma = jnp.exp(params["gamma_log"]).astype(f32)

    # Fused x-side weight: [gamma*B_re^T | gamma*B_im^T | D^T], zero-padded.
    w_x = jnp.zeros((F_in_pad, W_X), f32)
    w_x = w_x.at[:F_in, 0:S].set(params["B_re"].T.astype(f32) * gamma[None, :])
    w_x = w_x.at[:F_in, S_pad:S_pad + S].set(
        params["B_im"].T.astype(f32) * gamma[None, :])
    w_x = w_x.at[:F_in, TWO_S:TWO_S + F_out].set(params["D"].T.astype(f32))

    # Output-side weight: [C_re^T ; -C_im^T].
    w_out = jnp.zeros((TWO_S, F_out_pad), f32)
    w_out = w_out.at[0:S, 0:F_out].set(params["C_re"].T.astype(f32))
    w_out = w_out.at[S_pad:S_pad + S, 0:F_out].set(-params["C_im"].T.astype(f32))

    # Per-pass Lambda^(2^k) and per-row Lambda^(tau+1) tables (real arithmetic),
    # packed [re | im] along lanes and zero-padded.
    def lam_pow_rows(exps):
        e = exps[:, None]
        mod = lam_mod[None, :] ** e
        ang = e * theta[None, :]
        re, im = mod * jnp.cos(ang), mod * jnp.sin(ang)
        tbl = jnp.zeros((exps.shape[0], TWO_S), f32)
        return tbl.at[:, 0:S].set(re).at[:, S_pad:S_pad + S].set(im)

    lam_tbl = lam_pow_rows(jnp.array(offsets, f32))            # [P, TWO_S]
    pow_tbl = lam_pow_rows(jnp.arange(1, Tc + 1, dtype=f32))   # [Tc, TWO_S]

    # Lane-dense, time-padded bf16 input (padded rows/lanes are exact zeros).
    x_p = jnp.zeros((B, T_pad, F_in_pad), bf16)
    x_p = x_p.at[:, :T, :F_in].set(x.astype(bf16))

    kernel = make_lru_kernel(Tc, S_pad, F_out_pad, offsets)
    const = lambda b, c: (0, 0)

    # VMEM budget from actual buffers (x/out double-buffered, weights resident).
    need = (Tc * W_X * 4 + TWO_S * 4
            + 2 * Tc * (F_in_pad + F_out_pad) * 2
            + 2 * ((F_in_pad * W_X + TWO_S * F_out_pad) * 2
                   + (P + Tc) * TWO_S * 4))
    vmem_limit = int(min(48 * 2 ** 20, max(32 * 2 ** 20, 2 * need)))

    flops = B * num_chunks * (2 * Tc * F_in_pad * W_X
                              + 2 * Tc * TWO_S * F_out_pad
                              + (P + 1) * 8 * Tc * S_pad)
    bytes_accessed = (B * T_pad * (F_in_pad + F_out_pad) * 2
                      + (F_in_pad * W_X + TWO_S * F_out_pad) * 2
                      + (P + Tc) * TWO_S * 4)

    out_padded = pl.pallas_call(
        kernel,
        out_shape=jax.ShapeDtypeStruct((B, T_pad, F_out_pad), bf16),
        grid_spec=pltpu.PrefetchScalarGridSpec(
            num_scalar_prefetch=0,
            grid=(B, num_chunks),
            in_specs=[
                pl.BlockSpec((None, Tc, F_in_pad), lambda b, c: (b, c, 0)),  # x
                pl.BlockSpec((F_in_pad, W_X), const),        # [gB_re|gB_im|D^T]
                pl.BlockSpec((TWO_S, F_out_pad), const),     # [C_re^T; -C_im^T]
                pl.BlockSpec((P, TWO_S), const),             # Lambda^(2^k)
                pl.BlockSpec((Tc, TWO_S), const),            # Lambda^(tau+1)
            ],
            out_specs=pl.BlockSpec((None, Tc, F_out_pad), lambda b, c: (b, c, 0)),
            scratch_shapes=[
                pltpu.VMEM((Tc, W_X), jnp.float32),   # [h_re|h_im|D@x], in-place
                pltpu.VMEM((1, TWO_S), jnp.float32),  # carried state across chunks
            ],
        ),
        compiler_params=pltpu.CompilerParams(
            # TODO(synk): if batch can be 1, fold a state/lane split into the
            # parallel axis so both v7x TensorCores stay busy.
            dimension_semantics=("parallel", "arbitrary"),
            vmem_limit_bytes=vmem_limit,
        ),
        cost_estimate=pl.CostEstimate(
            flops=flops, transcendentals=0, bytes_accessed=bytes_accessed),
    )(x_p, w_x.astype(bf16), w_out.astype(bf16), lam_tbl, pow_tbl)

    return out_padded[:, :T, :F_out].astype(jnp.float32)


def init_lru_params(key, in_features, out_features, state_features,
                    rmin=0.9, rmax=1.0, max_phase=6.283):
    """Deterministic parameter init mirroring the PyTorch __init__ formulas."""
    kD, ku1, ku2, kBr, kBi, kCr, kCi = jax.random.split(key, 7)
    D = jax.random.normal(kD, (out_features, in_features),
                          jnp.float32) / math.sqrt(in_features)
    u1 = jax.random.uniform(ku1, (state_features,), jnp.float32)
    u2 = jax.random.uniform(ku2, (state_features,), jnp.float32)
    nu_log = jnp.log(-0.5 * jnp.log(u1 * (rmax + rmin) * (rmax - rmin) + rmin ** 2))
    theta_log = jnp.log(max_phase * u2)
    lam_mod = jnp.exp(-jnp.exp(nu_log))
    gamma_log = jnp.log(jnp.sqrt(1.0 - jnp.square(lam_mod)))
    B_re = jax.random.normal(kBr, (state_features, in_features),
                             jnp.float32) / math.sqrt(2 * in_features)
    B_im = jax.random.normal(kBi, (state_features, in_features),
                             jnp.float32) / math.sqrt(2 * in_features)
    C_re = jax.random.normal(kCr, (out_features, state_features),
                             jnp.float32) / math.sqrt(state_features)
    C_im = jax.random.normal(kCi, (out_features, state_features),
                             jnp.float32) / math.sqrt(state_features)
    return dict(D=D, nu_log=nu_log, theta_log=theta_log, gamma_log=gamma_log,
                B_re=B_re, B_im=B_im, C_re=C_re, C_im=C_im)


def lru_reference(x, params):
    """Pure-JAX reference (complex64 sequential scan) for validation."""
    lam_mod = jnp.exp(-jnp.exp(params["nu_log"]))
    theta = jnp.exp(params["theta_log"])
    Lam = (lam_mod * jnp.cos(theta) + 1j * lam_mod * jnp.sin(theta)).astype(jnp.complex64)
    gamma = jnp.exp(params["gamma_log"]).astype(jnp.complex64)
    Bc = (params["B_re"] + 1j * params["B_im"]).astype(jnp.complex64)
    Cc = (params["C_re"] + 1j * params["C_im"]).astype(jnp.complex64)
    D = params["D"]

    def one_seq(xs):  # xs: [T, F_in]
        def step(state, xt):
            state = Lam * state + gamma * (Bc @ xt.astype(jnp.complex64))
            y = jnp.real(Cc @ state) + D @ xt
            return state, y
        s0 = jnp.zeros(params["nu_log"].shape, jnp.complex64)
        _, ys = lax.scan(step, s0, xs)
        return ys

    return jax.vmap(one_seq)(x)


if __name__ == "__main__":
    batch, seq = 2, 32
    in_features, out_features, state_features = 8, 8, 16

    key = jax.random.PRNGKey(0)
    k_params, k_x = jax.random.split(key)
    params = init_lru_params(k_params, in_features, out_features, state_features)
    x = jax.random.normal(k_x, (batch, seq, in_features), jnp.float32)

    # time_chunk=16 -> grid=(2, 2): exercises the carried state between chunks,
    # both the aligned (offset=8) and misaligned (1/2/4) scan passes, and keeps
    # the parallel batch axis >= 2 for v7x's two TensorCores.
    out = jax.block_until_ready(lru_forward(x, params, time_chunk=16))
    ref = jax.block_until_ready(lru_reference(x, params))

    assert out.shape == (batch, seq, out_features)
    # bf16 MXU inputs + bf16 output store -> tolerance loosened vs complex64 ref.
    max_diff = float(jnp.max(jnp.abs(out - ref)))
    assert jnp.allclose(out, ref, atol=5e-2, rtol=5e-2), (
        f"mismatch vs reference, max abs diff {max_diff}")

    print("KERNEL_OK")
</pallas_src>

<mosaic_0001>
module attributes {stable_mosaic.version = 11 : i64} {
  func.func @kernel(%arg0: i32, %arg1: i32, %arg2: memref<1x16x128xbf16, #tpu.memory_space<vmem>>, %arg3: memref<128x384xbf16, #tpu.memory_space<vmem>>, %arg4: memref<256x128xbf16, #tpu.memory_space<vmem>>, %arg5: memref<4x256xf32, #tpu.memory_space<vmem>>, %arg6: memref<16x256xf32, #tpu.memory_space<vmem>>, %arg7: memref<1x16x128xbf16, #tpu.memory_space<vmem>>, %arg8: memref<16x384xf32, #tpu.memory_space<vmem>>, %arg9: memref<1x256xf32, #tpu.memory_space<vmem>>) attributes {dimension_semantics = [#tpu.dimension_semantics<parallel>, #tpu.dimension_semantics<arbitrary>], iteration_bounds = array<i64: 2, 2>, scalar_prefetch = 0 : i64, scratch_operands = 2 : i64, tpu.core_type = #tpu.core_type<tc>, window_params = [{transform_indices = @transform_0, window_bounds = array<i64: 1, 16, 128>}, {pipeline_mode = #tpu.pipeline_mode<synchronous>, transform_indices = @transform_1, window_bounds = array<i64: 128, 384>}, {pipeline_mode = #tpu.pipeline_mode<synchronous>, transform_indices = @transform_2, window_bounds = array<i64: 256, 128>}, {pipeline_mode = #tpu.pipeline_mode<synchronous>, transform_indices = @transform_3, window_bounds = array<i64: 4, 256>}, {pipeline_mode = #tpu.pipeline_mode<synchronous>, transform_indices = @transform_4, window_bounds = array<i64: 16, 256>}, {transform_indices = @transform_5, window_bounds = array<i64: 1, 16, 128>}]} {
    %c0 = arith.constant 0 : index
    %c0_0 = arith.constant 0 : index
    %c0_1 = arith.constant 0 : index
    %0 = vector.load %arg2[%c0, %c0_0, %c0_1] : memref<1x16x128xbf16, #tpu.memory_space<vmem>>, vector<1x16x128xbf16>
    %1 = vector.shape_cast %0 : vector<1x16x128xbf16> to vector<16x128xbf16>
    %c0_2 = arith.constant 0 : index
    %c0_3 = arith.constant 0 : index
    %2 = vector.load %arg3[%c0_2, %c0_3] : memref<128x384xbf16, #tpu.memory_space<vmem>>, vector<128x384xbf16>
    %cst = arith.constant dense<0.000000e+00> : vector<16x384xf32>
    %3 = tpu.matmul %1, %2, %cst {dimension_numbers = #tpu.dot_dimension_numbers<[1], [0], [0], [1], [0, 0, 1, 1], [], []>} : vector<16x128xbf16>, vector<128x384xbf16>, vector<16x384xf32> -> vector<16x384xf32>
    %c0_4 = arith.constant 0 : index
    %c0_5 = arith.constant 0 : index
    %4 = vector.load %arg8[%c0_4, %c0_5] : memref<16x384xf32, #tpu.memory_space<vmem>>, vector<16x384xf32>
    tpu.vector_store %arg8[%c0_4, %c0_5], %3 {strides = array<i32>} : memref<16x384xf32, #tpu.memory_space<vmem>>, vector<16x384xf32>,
    %c0_6 = arith.constant 0 : index
    %c0_7 = arith.constant 0 : index
    %5 = vector.load %arg5[%c0_6, %c0_7] : memref<4x256xf32, #tpu.memory_space<vmem>>, vector<1x128xf32>
    %c0_8 = arith.constant 0 : index
    %c128 = arith.constant 128 : index
    %6 = vector.load %arg5[%c0_8, %c128] : memref<4x256xf32, #tpu.memory_space<vmem>>, vector<1x128xf32>
    %c0_9 = arith.constant 0 : index
    %c0_10 = arith.constant 0 : index
    %7 = vector.load %arg8[%c0_9, %c0_10] : memref<16x384xf32, #tpu.memory_space<vmem>>, vector<16x128xf32>
    %c0_11 = arith.constant 0 : index
    %c128_12 = arith.constant 128 : index
    %8 = vector.load %arg8[%c0_11, %c128_12] : memref<16x384xf32, #tpu.memory_space<vmem>>, vector<16x128xf32>
    %cst_13 = arith.constant 0.000000e+00 : f32
    %9 = vector.broadcast %cst_13 : f32 to vector<1x128xf32>
    %10 = vector.extract_strided_slice %7 {offsets = [0, 0], sizes = [15, 128], strides = [1, 1]} : vector<16x128xf32> to vector<15x128xf32>
    %11 = tpu.concatenate %9, %10 in 0 : vector<1x128xf32>, vector<15x128xf32> -> vector<16x128xf32>
    %12 = vector.extract_strided_slice %8 {offsets = [0, 0], sizes = [15, 128], strides = [1, 1]} : vector<16x128xf32> to vector<15x128xf32>
    %13 = tpu.concatenate %9, %12 in 0 : vector<1x128xf32>, vector<15x128xf32> -> vector<16x128xf32>
    %14 = vector.broadcast %5 : vector<1x128xf32> to vector<16x128xf32>
    %15 = arith.mulf %14, %11 : vector<16x128xf32>
    %16 = arith.addf %7, %15 : vector<16x128xf32>
    %17 = vector.broadcast %6 : vector<1x128xf32> to vector<16x128xf32>
    %18 = arith.mulf %17, %13 : vector<16x128xf32>
    %19 = arith.subf %16, %18 : vector<16x128xf32>
    %20 = vector.broadcast %5 : vector<1x128xf32> to vector<16x128xf32>
    %21 = arith.mulf %20, %13 : vector<16x128xf32>
    %22 = arith.addf %8, %21 : vector<16x128xf32>
    %23 = vector.broadcast %6 : vector<1x128xf32> to vector<16x128xf32>
    %24 = arith.mulf %23, %11 : vector<16x128xf32>
    %25 = arith.addf %22, %24 : vector<16x128xf32>
    %26 = tpu.concatenate %19, %25 in 1 : vector<16x128xf32>, vector<16x128xf32> -> vector<16x256xf32>
    %c0_14 = arith.constant 0 : index
    %c0_15 = arith.constant 0 : index
    %27 = vector.load %arg8[%c0_14, %c0_15] : memref<16x384xf32, #tpu.memory_space<vmem>>, vector<16x256xf32>
    tpu.vector_store %arg8[%c0_14, %c0_15], %26 {strides = array<i32>} : memref<16x384xf32, #tpu.memory_space<vmem>>, vector<16x256xf32>,
    %c1 = arith.constant 1 : index
    %c0_16 = arith.constant 0 : index
    %28 = vector.load %arg5[%c1, %c0_16] : memref<4x256xf32, #tpu.memory_space<vmem>>, vector<1x128xf32>
    %c1_17 = arith.constant 1 : index
    %c128_18 = arith.constant 128 : index
    %29 = vector.load %arg5[%c1_17, %c128_18] : memref<4x256xf32, #tpu.memory_space<vmem>>, vector<1x128xf32>
    %c0_19 = arith.constant 0 : index
    %c0_20 = arith.constant 0 : index
    %30 = vector.load %arg8[%c0_19, %c0_20] : memref<16x384xf32, #tpu.memory_space<vmem>>, vector<16x128xf32>
    %c0_21 = arith.constant 0 : index
    %c128_22 = arith.constant 128 : index
    %31 = vector.load %arg8[%c0_21, %c128_22] : memref<16x384xf32, #tpu.memory_space<vmem>>, vector<16x128xf32>
    %cst_23 = arith.constant 0.000000e+00 : f32
    %32 = vector.broadcast %cst_23 : f32 to vector<2x128xf32>
    %33 = vector.extract_strided_slice %30 {offsets = [0, 0], sizes = [14, 128], strides = [1, 1]} : vector<16x128xf32> to vector<14x128xf32>
    %34 = tpu.concatenate %32, %33 in 0 : vector<2x128xf32>, vector<14x128xf32> -> vector<16x128xf32>
    %35 = vector.extract_strided_slice %31 {offsets = [0, 0], sizes = [14, 128], strides = [1, 1]} : vector<16x128xf32> to vector<14x128xf32>
    %36 = tpu.concatenate %32, %35 in 0 : vector<2x128xf32>, vector<14x128xf32> -> vector<16x128xf32>
    %37 = vector.broadcast %28 : vector<1x128xf32> to vector<16x128xf32>
    %38 = arith.mulf %37, %34 : vector<16x128xf32>
    %39 = arith.addf %30, %38 : vector<16x128xf32>
    %40 = vector.broadcast %29 : vector<1x128xf32> to vector<16x128xf32>
    %41 = arith.mulf %40, %36 : vector<16x128xf32>
    %42 = arith.subf %39, %41 : vector<16x128xf32>
    %43 = vector.broadcast %28 : vector<1x128xf32> to vector<16x128xf32>
    %44 = arith.mulf %43, %36 : vector<16x128xf32>
    %45 = arith.addf %31, %44 : vector<16x128xf32>
    %46 = vector.broadcast %29 : vector<1x128xf32> to vector<16x128xf32>
    %47 = arith.mulf %46, %34 : vector<16x128xf32>
    %48 = arith.addf %45, %47 : vector<16x128xf32>
    %49 = tpu.concatenate %42, %48 in 1 : vector<16x128xf32>, vector<16x128xf32> -> vector<16x256xf32>
    %c0_24 = arith.constant 0 : index
    %c0_25 = arith.constant 0 : index
    %50 = vector.load %arg8[%c0_24, %c0_25] : memref<16x384xf32, #tpu.memory_space<vmem>>, vector<16x256xf32>
    tpu.vector_store %arg8[%c0_24, %c0_25], %49 {strides = array<i32>} : memref<16x384xf32, #tpu.memory_space<vmem>>, vector<16x256xf32>,
    %c2 = arith.constant 2 : index
    %c0_26 = arith.constant 0 : index
    %51 = vector.load %arg5[%c2, %c0_26] : memref<4x256xf32, #tpu.memory_space<vmem>>, vector<1x128xf32>
    %c2_27 = arith.constant 2 : index
    %c128_28 = arith.constant 128 : index
    %52 = vector.load %arg5[%c2_27, %c128_28] : memref<4x256xf32, #tpu.memory_space<vmem>>, vector<1x128xf32>
    %c0_29 = arith.constant 0 : index
    %c0_30 = arith.constant 0 : index
    %53 = vector.load %arg8[%c0_29, %c0_30] : memref<16x384xf32, #tpu.memory_space<vmem>>, vector<16x128xf32>
    %c0_31 = arith.constant 0 : index
    %c128_32 = arith.constant 128 : index
    %54 = vector.load %arg8[%c0_31, %c128_32] : memref<16x384xf32, #tpu.memory_space<vmem>>, vector<16x128xf32>
    %cst_33 = arith.constant 0.000000e+00 : f32
    %55 = vector.broadcast %cst_33 : f32 to vector<4x128xf32>
    %56 = vector.extract_strided_slice %53 {offsets = [0, 0], sizes = [12, 128], strides = [1, 1]} : vector<16x128xf32> to vector<12x128xf32>
    %57 = tpu.concatenate %55, %56 in 0 : vector<4x128xf32>, vector<12x128xf32> -> vector<16x128xf32>
    %58 = vector.extract_strided_slice %54 {offsets = [0, 0], sizes = [12, 128], strides = [1, 1]} : vector<16x128xf32> to vector<12x128xf32>
    %59 = tpu.concatenate %55, %58 in 0 : vector<4x128xf32>, vector<12x128xf32> -> vector<16x128xf32>
    %60 = vector.broadcast %51 : vector<1x128xf32> to vector<16x128xf32>
    %61 = arith.mulf %60, %57 : vector<16x128xf32>
    %62 = arith.addf %53, %61 : vector<16x128xf32>
    %63 = vector.broadcast %52 : vector<1x128xf32> to vector<16x128xf32>
    %64 = arith.mulf %63, %59 : vector<16x128xf32>
    %65 = arith.subf %62, %64 : vector<16x128xf32>
    %66 = vector.broadcast %51 : vector<1x128xf32> to vector<16x128xf32>
    %67 = arith.mulf %66, %59 : vector<16x128xf32>
    %68 = arith.addf %54, %67 : vector<16x128xf32>
    %69 = vector.broadcast %52 : vector<1x128xf32> to vector<16x128xf32>
    %70 = arith.mulf %69, %57 : vector<16x128xf32>
    %71 = arith.addf %68, %70 : vector<16x128xf32>
    %72 = tpu.concatenate %65, %71 in 1 : vector<16x128xf32>, vector<16x128xf32> -> vector<16x256xf32>
    %c0_34 = arith.constant 0 : index
    %c0_35 = arith.constant 0 : index
    %73 = vector.load %arg8[%c0_34, %c0_35] : memref<16x384xf32, #tpu.memory_space<vmem>>, vector<16x256xf32>
    tpu.vector_store %arg8[%c0_34, %c0_35], %72 {strides = array<i32>} : memref<16x384xf32, #tpu.memory_space<vmem>>, vector<16x256xf32>,
    %c3 = arith.constant 3 : index
    %c0_36 = arith.constant 0 : index
    %74 = vector.load %arg5[%c3, %c0_36] : memref<4x256xf32, #tpu.memory_space<vmem>>, vector<1x128xf32>
    %c3_37 = arith.constant 3 : index
    %c128_38 = arith.constant 128 : index
    %75 = vector.load %arg5[%c3_37, %c128_38] : memref<4x256xf32, #tpu.memory_space<vmem>>, vector<1x128xf32>
    %c0_39 = arith.constant 0 : index
    %c0_40 = arith.constant 0 : index
    %76 = vector.load %arg8[%c0_39, %c0_40] : memref<16x384xf32, #tpu.memory_space<vmem>>, vector<8x128xf32>
    %c0_41 = arith.constant 0 : index
    %c128_42 = arith.constant 128 : index
    %77 = vector.load %arg8[%c0_41, %c128_42] : memref<16x384xf32, #tpu.memory_space<vmem>>, vector<8x128xf32>
    %c8 = arith.constant 8 : index
    %c0_43 = arith.constant 0 : index
    %78 = vector.load %arg8[%c8, %c0_43] : memref<16x384xf32, #tpu.memory_space<vmem>>, vector<8x128xf32>
    %c8_44 = arith.constant 8 : index
    %c128_45 = arith.constant 128 : index
    %79 = vector.load %arg8[%c8_44, %c128_45] : memref<16x384xf32, #tpu.memory_space<vmem>>, vector<8x128xf32>
    %80 = vector.broadcast %74 : vector<1x128xf32> to vector<8x128xf32>
    %81 = arith.mulf %80, %76 : vector<8x128xf32>
    %82 = arith.addf %78, %81 : vector<8x128xf32>
    %83 = vector.broadcast %75 : vector<1x128xf32> to vector<8x128xf32>
    %84 = arith.mulf %83, %77 : vector<8x128xf32>
    %85 = arith.subf %82, %84 : vector<8x128xf32>
    %86 = vector.broadcast %74 : vector<1x128xf32> to vector<8x128xf32>
    %87 = arith.mulf %86, %77 : vector<8x128xf32>
    %88 = arith.addf %79, %87 : vector<8x128xf32>
    %89 = vector.broadcast %75 : vector<1x128xf32> to vector<8x128xf32>
    %90 = arith.mulf %89, %76 : vector<8x128xf32>
    %91 = arith.addf %88, %90 : vector<8x128xf32>
    %92 = tpu.concatenate %85, %91 in 1 : vector<8x128xf32>, vector<8x128xf32> -> vector<8x256xf32>
    %c8_46 = arith.constant 8 : index
    %c0_47 = arith.constant 0 : index
    %93 = vector.load %arg8[%c8_46, %c0_47] : memref<16x384xf32, #tpu.memory_space<vmem>>, vector<8x256xf32>
    tpu.vector_store %arg8[%c8_46, %c0_47], %92 {strides = array<i32>} : memref<16x384xf32, #tpu.memory_space<vmem>>, vector<8x256xf32>,
    %c0_i32 = arith.constant 0 : i32
    %94 = arith.cmpi sgt, %arg1, %c0_i32 : i32
    %95 = arith.extui %94 : i1 to i32
    %c0_i32_48 = arith.constant 0 : i32
    %96 = arith.cmpi ne, %95, %c0_i32_48 : i32
    scf.if %96 {
      %c0_61 = arith.constant 0 : index
      %c0_62 = arith.constant 0 : index
      %109 = vector.load %arg9[%c0_61, %c0_62] : memref<1x256xf32, #tpu.memory_space<vmem>>, vector<1x128xf32>
      %c0_63 = arith.constant 0 : index
      %c128_64 = arith.constant 128 : index
      %110 = vector.load %arg9[%c0_63, %c128_64] : memref<1x256xf32, #tpu.memory_space<vmem>>, vector<1x128xf32>
      %c0_65 = arith.constant 0 : index
      %c0_66 = arith.constant 0 : index
      %111 = vector.load %arg6[%c0_65, %c0_66] : memref<16x256xf32, #tpu.memory_space<vmem>>, vector<16x128xf32>
      %c0_67 = arith.constant 0 : index
      %c128_68 = arith.constant 128 : index
      %112 = vector.load %arg6[%c0_67, %c128_68] : memref<16x256xf32, #tpu.memory_space<vmem>>, vector<16x128xf32>
      %c0_69 = arith.constant 0 : index
      %c0_70 = arith.constant 0 : index
      %113 = vector.load %arg8[%c0_69, %c0_70] : memref<16x384xf32, #tpu.memory_space<vmem>>, vector<16x128xf32>
      %c0_71 = arith.constant 0 : index
      %c128_72 = arith.constant 128 : index
      %114 = vector.load %arg8[%c0_71, %c128_72] : memref<16x384xf32, #tpu.memory_space<vmem>>, vector<16x128xf32>
      %115 = vector.broadcast %109 : vector<1x128xf32> to vector<16x128xf32>
      %116 = arith.mulf %111, %115 : vector<16x128xf32>
      %117 = arith.addf %113, %116 : vector<16x128xf32>
      %118 = vector.broadcast %110 : vector<1x128xf32> to vector<16x128xf32>
      %119 = arith.mulf %112, %118 : vector<16x128xf32>
      %120 = arith.subf %117, %119 : vector<16x128xf32>
      %121 = vector.broadcast %109 : vector<1x128xf32> to vector<16x128xf32>
      %122 = arith.mulf %112, %121 : vector<16x128xf32>
      %123 = arith.addf %114, %122 : vector<16x128xf32>
      %124 = vector.broadcast %110 : vector<1x128xf32> to vector<16x128xf32>
      %125 = arith.mulf %111, %124 : vector<16x128xf32>
      %126 = arith.addf %123, %125 : vector<16x128xf32>
      %127 = tpu.concatenate %120, %126 in 1 : vector<16x128xf32>, vector<16x128xf32> -> vector<16x256xf32>
      %c0_73 = arith.constant 0 : index
      %c0_74 = arith.constant 0 : index
      %128 = vector.load %arg8[%c0_73, %c0_74] : memref<16x384xf32, #tpu.memory_space<vmem>>, vector<16x256xf32>
      tpu.vector_store %arg8[%c0_73, %c0_74], %127 {strides = array<i32>} : memref<16x384xf32, #tpu.memory_space<vmem>>, vector<16x256xf32>,
    } else {
    }
    %c15 = arith.constant 15 : index
    %c0_49 = arith.constant 0 : index
    %97 = vector.load %arg8[%c15, %c0_49] : memref<16x384xf32, #tpu.memory_space<vmem>>, vector<1x256xf32>
    %c0_50 = arith.constant 0 : index
    %c0_51 = arith.constant 0 : index
    %98 = vector.load %arg9[%c0_50, %c0_51] : memref<1x256xf32, #tpu.memory_space<vmem>>, vector<1x256xf32>
    tpu.vector_store %arg9[%c0_50, %c0_51], %97 {strides = array<i32>} : memref<1x256xf32, #tpu.memory_space<vmem>>, vector<1x256xf32>,
    %c0_52 = arith.constant 0 : index
    %c0_53 = arith.constant 0 : index
    %99 = vector.load %arg8[%c0_52, %c0_53] : memref<16x384xf32, #tpu.memory_space<vmem>>, vector<16x256xf32>
    %100 = arith.truncf %99 : vector<16x256xf32> to vector<16x256xbf16>
    %c0_54 = arith.constant 0 : index
    %c0_55 = arith.constant 0 : index
    %101 = vector.load %arg4[%c0_54, %c0_55] : memref<256x128xbf16, #tpu.memory_space<vmem>>, vector<256x128xbf16>
    %cst_56 = arith.constant dense<0.000000e+00> : vector<16x128xf32>
    %102 = tpu.matmul %100, %101, %cst_56 {dimension_numbers = #tpu.dot_dimension_numbers<[1], [0], [0], [1], [0, 0, 1, 1], [], []>} : vector<16x256xbf16>, vector<256x128xbf16>, vector<16x128xf32> -> vector<16x128xf32>
    %c0_57 = arith.constant 0 : index
    %c256 = arith.constant 256 : index
    %103 = vector.load %arg8[%c0_57, %c256] : memref<16x384xf32, #tpu.memory_space<vmem>>, vector<16x128xf32>
    %104 = arith.addf %102, %103 : vector<16x128xf32>
    %105 = arith.truncf %104 : vector<16x128xf32> to vector<16x128xbf16>
    %c0_58 = arith.constant 0 : index
    %c0_59 = arith.constant 0 : index
    %c0_60 = arith.constant 0 : index
    %106 = vector.load %arg7[%c0_58, %c0_59, %c0_60] : memref<1x16x128xbf16, #tpu.memory_space<vmem>>, vector<1x16x128xbf16>
    %107 = vector.shape_cast %106 : vector<1x16x128xbf16> to vector<16x128xbf16>
    %108 = vector.shape_cast %105 : vector<16x128xbf16> to vector<1x16x128xbf16>
    tpu.vector_store %arg7[%c0_58, %c0_59, %c0_60], %108 {strides = array<i32>} : memref<1x16x128xbf16, #tpu.memory_space<vmem>>, vector<1x16x128xbf16>,
    return
  }
  func.func @transform_0(%arg0: i32, %arg1: i32) -> (i32, i32, i32) {
    %c0_i32 = arith.constant 0 : i32
    %c0_i32_0 = arith.constant 0 : i32
    return %arg0, %arg1, %c0_i32 : i32, i32, i32
  }
  func.func @transform_1(%arg0: i32, %arg1: i32) -> (i32, i32) {
    %c0_i32 = arith.constant 0 : i32
    %c0_i32_0 = arith.constant 0 : i32
    %c0_i32_1 = arith.constant 0 : i32
    return %c0_i32, %c0_i32_0 : i32, i32
  }
  func.func @transform_2(%arg0: i32, %arg1: i32) -> (i32, i32) {
    %c0_i32 = arith.constant 0 : i32
    %c0_i32_0 = arith.constant 0 : i32
    %c0_i32_1 = arith.constant 0 : i32
    return %c0_i32, %c0_i32_0 : i32, i32
  }
  func.func @transform_3(%arg0: i32, %arg1: i32) -> (i32, i32) {
    %c0_i32 = arith.constant 0 : i32
    %c0_i32_0 = arith.constant 0 : i32
    %c0_i32_1 = arith.constant 0 : i32
    return %c0_i32, %c0_i32_0 : i32, i32
  }
  func.func @transform_4(%arg0: i32, %arg1: i32) -> (i32, i32) {
    %c0_i32 = arith.constant 0 : i32
    %c0_i32_0 = arith.constant 0 : i32
    %c0_i32_1 = arith.constant 0 : i32
    return %c0_i32, %c0_i32_0 : i32, i32
  }
  func.func @transform_5(%arg0: i32, %arg1: i32) -> (i32, i32, i32) {
    %c0_i32 = arith.constant 0 : i32
    %c0_i32_0 = arith.constant 0 : i32
    return %arg0, %arg1, %c0_i32 : i32, i32, i32
  }
}

</mosaic_0001>

<llo_original>
// kernel: tpu_custom_call.1
$region0: #{tpu_custom_call.1}
  #allocation0 [shape = 'u32[]', space=smem, size = 0x4, offset = 0x4, fixed_abs, tag = 'smem constant byte address 0x4 - core index']
  #allocation1 [shape = 'u32[144,128]{1,0:T(1,128)}', space=vmem, size = 0x12000, scoped, tag = 'internal scratch']
  #allocation2 [shape = 'f32[16,384]{1,0:T(8,128)}', space=vmem, size = 0x6000, scoped, tag = 'scratch operand']
  #allocation3 [shape = 'f32[1,256]{1,0:T(1,128)}', space=vmem, size = 0x400, scoped, tag = 'scratch operand']
  %s0 = inlined_call_operand.hbm [shape: bf16[2,32,128], index: 0, kind: input, shape index: {}]
  %s1 = inlined_call_operand.hbm [shape: bf16[128,384], index: 1, kind: input, shape index: {}]
  %s2 = inlined_call_operand.hbm [shape: bf16[256,128], index: 2, kind: input, shape index: {}]
  %s3 = inlined_call_operand.vmem [shape: f32[4,256], index: 3, kind: input, shape index: {}]
  %s4 = inlined_call_operand.hbm [shape: f32[16,256], index: 4, kind: input, shape index: {}]
  %s5 = inlined_call_operand.hbm [shape: bf16[2,32,128], index: 5, kind: output, shape index: {}]
  %s6 = sld [smem:[#allocation0]]
  $region73: #{tpu_custom_call.1} parent=0
    _
  %s8 = ssub.s32 1, %s6
  %s9 = scalar_select 0, %s8, %s6
  $region1: #{tpu_custom_call.1} parent=0
    #allocation4 [shape = 'u8[8192]{0}', space=vmem, size = 0x2000, scoped, tag = 'input window, operand 0']
    #allocation5 [shape = 's32[2]{0}', space=sflag, size = 0x8, scoped, tag = 'scoped memory for tpu_custom_call.1']
    #allocation6 [shape = 's32[2]{0}', space=sflag, size = 0x8, scoped, tag = 'scoped memory for tpu_custom_call.1']
    #allocation7 [shape = 'u8[98304]{0}', space=vmem, size = 0x18000, scoped, tag = 'input window, operand 1, single buffered']
    #allocation8 [shape = 's32[1]{0}', space=sflag, size = 0x4, scoped, tag = 'scoped memory for tpu_custom_call.1']
    #allocation9 [shape = 'u8[65536]{0}', space=vmem, size = 0x10000, scoped, tag = 'input window, operand 2, single buffered']
    #allocation10 [shape = 'u8[16384]{0}', space=vmem, size = 0x4000, scoped, tag = 'input window, operand 4, single buffered']
    #allocation11 [shape = 's32[1]{0}', space=sflag, size = 0x4, scoped, tag = 'scoped memory for tpu_custom_call.1']
    #allocation12 [shape = 'u8[8192]{0}', space=vmem, size = 0x2000, scoped, tag = 'output window, operand 0']
    %10 = vsyncpa [#allocation5], 0
    %s11 = scalar_lea.sflag [#allocation5], 1
    %12 = vsyncpa %s11, 0
    %13 = vsyncpa [#allocation8], 0
    %14 = vsyncpa [#allocation11], 0
    %15 = vsyncpa [#allocation6], 0
    %s16 = scalar_lea.sflag [#allocation6], 1
    %17 = vsyncpa %s16, 0
    loop: start=0, step=1, limit=6
    $region2: #{tpu_custom_call.1} parent=1 // loop_pre_header
      _
    $region3: #{tpu_custom_call.1} parent=1 // loop_header
      %s19 = sphi 0, %s23
      %p20 = scmp.ge.s32.totalorder %s19, 6
      %s26 = sphi 0, %s38
      %s27 = sphi 0, %s34
      %s28 = sphi 0, %s26
      %s29 = sphi 0, %s27
      %s30 = sphi 0, %s28
      %s31 = sphi 0, %s29
      %s43 = sphi 0, %s45
      %s46 = sphi 0, %s43
      %s47 = sphi 0, %s46
      %s63 = sphi 0, %s47
      %s67 = sphi 0, %s67
      %s69 = sphi 0, %s67
      %s70 = sphi 0, %s69
      %s84 = sphi 0, %s70
      %s88 = sphi 0, %s88
      %s90 = sphi 0, %s88
      %s91 = sphi 0, %s90
      %s105 = sphi 0, %s91
      %s109 = sphi 0, %s109
      %s111 = sphi 0, %s109
      %s112 = sphi 0, %s111
      %s126 = sphi 0, %s112
      %s130 = sphi 0, %s130
      %s132 = sphi 0, %s130
      %s133 = sphi 0, %s132
      %s147 = sphi 0, %s133
      %s155 = sphi 0, %s157
      %s158 = sphi 0, %s155
      %s159 = sphi 0, %s158
      %s175 = sphi 0, %s159
    $region4: #{tpu_custom_call.1} parent=1 // loop_header_branch
      %22 = sbr.rel (%p20) target = $region8
    $region5: #{tpu_custom_call.1} parent=1 // loop_body
      %s24 = ssub.s32 %s19, 1
      %s25 = ssub.s32 %s19, 2
      %s32 = sadd.s32 1, %s27
      %p33 = scmp.ge.s32.totalorder %s32, 2
      %s34 = scalar_select %p33, 0, %s32
      %s35 = sadd.s32 1, %s26
      %s36 = scalar_select %p33, %s35, %s26
      %p37 = scmp.ge.s32.totalorder %s36, 2
      %s38 = scalar_select %p37, 0, %s36
      %s39 = ssub.s32 %s26, %s38
      %s40 = ssub.s32 %s27, %s34
      %s41 = sor.u32 %s39, %s40
      %p42 = scmp.eq.s32.totalorder %s41, 0
      %s44 = sadd.s32 %s43, 1
      %s45 = scalar_select %p42, %s43, %s44
      %p48 = pneg %p42
      %p49 = scmp.eq.s32.totalorder %s19, 3
      %p50 = por %p48, %p49
      %p51 = scmp.ne.s32.totalorder %s43, %s46
      %p52 = scmp.eq.s32.totalorder %s19, 0
      %p53 = por %p51, %p52
      %p54 = scmp.ne.s32.totalorder %s43, %s46
      %p55 = scmp.eq.s32.totalorder %s24, 3
      %p56 = por %p54, %p55
      %p57 = scmp.ne.s32.totalorder %s46, %s47
      %p58 = scmp.eq.s32.totalorder %s24, 0
      %p59 = por %p57, %p58
      %p60 = scmp.ne.s32.totalorder %s46, %s47
      %p61 = scmp.eq.s32.totalorder %s25, 3
      %p62 = por %p60, %p61
      %p64 = scmp.ne.s32.totalorder %s47, %s63
      %p65 = scmp.eq.s32.totalorder %s25, 0
      %p66 = por %p64, %p65
      %s68 = sadd.s32 %s67, 1
      %p71 = scmp.eq.s32.totalorder %s19, 3
      %p72 = scmp.ne.s32.totalorder %s67, %s69
      %p73 = scmp.eq.s32.totalorder %s19, 0
      %p74 = por %p72, %p73
      %p75 = scmp.ne.s32.totalorder %s67, %s69
      %p76 = scmp.eq.s32.totalorder %s24, 3
      %p77 = por %p75, %p76
      %p78 = scmp.ne.s32.totalorder %s69, %s70
      %p79 = scmp.eq.s32.totalorder %s24, 0
      %p80 = por %p78, %p79
      %p81 = scmp.ne.s32.totalorder %s69, %s70
      %p82 = scmp.eq.s32.totalorder %s25, 3
      %p83 = por %p81, %p82
      %p85 = scmp.ne.s32.totalorder %s70, %s84
      %p86 = scmp.eq.s32.totalorder %s25, 0
      %p87 = por %p85, %p86
      %s89 = sadd.s32 %s88, 1
      %p92 = scmp.eq.s32.totalorder %s19, 3
      %p93 = scmp.ne.s32.totalorder %s88, %s90
      %p94 = scmp.eq.s32.totalorder %s19, 0
      %p95 = por %p93, %p94
      %p96 = scmp.ne.s32.totalorder %s88, %s90
      %p97 = scmp.eq.s32.totalorder %s24, 3
      %p98 = por %p96, %p97
      %p99 = scmp.ne.s32.totalorder %s90, %s91
      %p100 = scmp.eq.s32.totalorder %s24, 0
      %p101 = por %p99, %p100
      %p102 = scmp.ne.s32.totalorder %s90, %s91
      %p103 = scmp.eq.s32.totalorder %s25, 3
      %p104 = por %p102, %p103
      %p106 = scmp.ne.s32.totalorder %s91, %s105
      %p107 = scmp.eq.s32.totalorder %s25, 0
      %p108 = por %p106, %p107
      %s110 = sadd.s32 %s109, 1
      %p113 = scmp.eq.s32.totalorder %s19, 3
      %p114 = scmp.ne.s32.totalorder %s109, %s111
      %p115 = scmp.eq.s32.totalorder %s19, 0
      %p116 = por %p114, %p115
      %p117 = scmp.ne.s32.totalorder %s109, %s111
      %p118 = scmp.eq.s32.totalorder %s24, 3
      %p119 = por %p117, %p118
      %p120 = scmp.ne.s32.totalorder %s111, %s112
      %p121 = scmp.eq.s32.totalorder %s24, 0
      %p122 = por %p120, %p121
      %p123 = scmp.ne.s32.totalorder %s111, %s112
      %p124 = scmp.eq.s32.totalorder %s25, 3
      %p125 = por %p123, %p124
      %p127 = scmp.ne.s32.totalorder %s112, %s126
      %p128 = scmp.eq.s32.totalorder %s25, 0
      %p129 = por %p127, %p128
      %s131 = sadd.s32 %s130, 1
      %p134 = scmp.eq.s32.totalorder %s19, 3
      %p135 = scmp.ne.s32.totalorder %s130, %s132
      %p136 = scmp.eq.s32.totalorder %s19, 0
      %p137 = por %p135, %p136
      %p138 = scmp.ne.s32.totalorder %s130, %s132
      %p139 = scmp.eq.s32.totalorder %s24, 3
      %p140 = por %p138, %p139
      %p141 = scmp.ne.s32.totalorder %s132, %s133
      %p142 = scmp.eq.s32.totalorder %s24, 0
      %p143 = por %p141, %p142
      %p144 = scmp.ne.s32.totalorder %s132, %s133
      %p145 = scmp.eq.s32.totalorder %s25, 3
      %p146 = por %p144, %p145
      %p148 = scmp.ne.s32.totalorder %s133, %s147
      %p149 = scmp.eq.s32.totalorder %s25, 0
      %p150 = por %p148, %p149
      %s151 = ssub.s32 %s26, %s38
      %s152 = ssub.s32 %s27, %s34
      %s153 = sor.u32 %s151, %s152
      %p154 = scmp.eq.s32.totalorder %s153, 0
      %s156 = sadd.s32 %s155, 1
      %s157 = scalar_select %p154, %s155, %s156
      %p160 = pneg %p154
      %p161 = scmp.eq.s32.totalorder %s19, 3
      %p162 = por %p160, %p161
      %p163 = scmp.ne.s32.totalorder %s155, %s158
      %p164 = scmp.eq.s32.totalorder %s19, 0
      %p165 = por %p163, %p164
      %p166 = scmp.ne.s32.totalorder %s155, %s158
      %p167 = scmp.eq.s32.totalorder %s24, 3
      %p168 = por %p166, %p167
      %p169 = scmp.ne.s32.totalorder %s158, %s159
      %p170 = scmp.eq.s32.totalorder %s24, 0
      %p171 = por %p169, %p170
      %p172 = scmp.ne.s32.totalorder %s158, %s159
      %p173 = scmp.eq.s32.totalorder %s25, 3
      %p174 = por %p172, %p173
      %p176 = scmp.ne.s32.totalorder %s159, %s175
      %p177 = scmp.eq.s32.totalorder %s25, 0
      %p178 = por %p176, %p177
      %p179 = scmp.le.s32.totalorder 1, %s19
      %p180 = scmp.lt.s32.totalorder %s19, 5
      %p181 = pnand %p179, %p180
      %p182 = pneg %p181
      // Predicated region
      $region9: #{tpu_custom_call.1} parent=5 // pred_check
        _
      $region10: #{tpu_custom_call.1} parent=5 // pred_check_branch
        %184 = sbr.rel (%p181) target = $region12
      $region11: #{tpu_custom_call.1} parent=5 // pred_region
        %s185 = ssub.s32 %s19, 1
        // Predicated region
        $region13: #{tpu_custom_call.1} parent=11 // pred_check
          %p186 = pneg %p80
        $region14: #{tpu_custom_call.1} parent=11 // pred_check_branch
          %188 = sbr.rel (%p186) target = $region16
        $region15: #{tpu_custom_call.1} parent=11 // pred_region
          %s190 = ssub.s32 3072, 3072
          %191 = vsyncadd [#allocation8], %s190
          %s192 = sshll.u32 [#allocation7], 4
          %s193 = int_to_ptr.vmem [resolvable:$true] %s192
          %198 = dma.hbm_to_vmem [thread:$0]  %s1, 3072, %s193, [#allocation8], 192, 192, 12
        $region16: #{tpu_custom_call.1} parent=11 // pred_fallthru
          _
        // Predicated region
        $region17: #{tpu_custom_call.1} parent=11 // pred_check
          %p199 = pneg %p101
        $region18: #{tpu_custom_call.1} parent=11 // pred_check_branch
          %201 = sbr.rel (%p199) target = $region20
        $region19: #{tpu_custom_call.1} parent=11 // pred_region
          %s203 = ssub.s32 2048, 2048
          %204 = vsyncadd [#allocation8], %s203
          %s205 = sshll.u32 [#allocation9], 4
          %s206 = int_to_ptr.vmem [resolvable:$true] %s205
          %211 = dma.hbm_to_vmem [thread:$0]  %s2, 2048, %s206, [#allocation8], 64, 64, 4
        $region20: #{tpu_custom_call.1} parent=11 // pred_fallthru
          _
        // Predicated region
        $region21: #{tpu_custom_call.1} parent=11 // pred_check
          %p212 = pneg %p122
        $region22: #{tpu_custom_call.1} parent=11 // pred_check_branch
          %214 = sbr.rel (%p212) target = $region24
        $region23: #{tpu_custom_call.1} parent=11 // pred_region
          _
        $region24: #{tpu_custom_call.1} parent=11 // pred_fallthru
          _
        // Predicated region
        $region25: #{tpu_custom_call.1} parent=11 // pred_check
          %p215 = pneg %p143
        $region26: #{tpu_custom_call.1} parent=11 // pred_check_branch
          %217 = sbr.rel (%p215) target = $region28
        $region27: #{tpu_custom_call.1} parent=11 // pred_region
          %s219 = ssub.s32 512, 512
          %220 = vsyncadd [#allocation11], %s219
          %s221 = sshll.u32 [#allocation10], 4
          %s222 = int_to_ptr.vmem [resolvable:$true] %s221
          %227 = dma.hbm_to_vmem [thread:$0]  %s4, 512, %s222, [#allocation11], 256, 256, 16
        $region28: #{tpu_custom_call.1} parent=11 // pred_fallthru
          _
      $region12: #{tpu_custom_call.1} parent=5 // pred_fallthru
        _
      %p228 = scmp.lt.s32.totalorder %s19, 4
      // Predicated region
      $region29: #{tpu_custom_call.1} parent=5 // pred_check
        %p229 = pneg %p228
      $region30: #{tpu_custom_call.1} parent=5 // pred_check_branch
        %231 = sbr.rel (%p229) target = $region32
      $region31: #{tpu_custom_call.1} parent=5 // pred_region
        // Predicated region
        $region33: #{tpu_custom_call.1} parent=31 // pred_check
          %p232 = pneg %p53
        $region34: #{tpu_custom_call.1} parent=31 // pred_check_branch
          %234 = sbr.rel (%p232) target = $region36
        $region35: #{tpu_custom_call.1} parent=31 // pred_region
          %s235 = sand.u32 %s43, 1
          %s236 = scalar_lea.sflag [#allocation5], %s235
          %s237 = sand.u32 %s43, 1
          %s238 = smul.addr %s237, 8
          %s239 = scalar_lea.vmem [#allocation4], %s238
          %s240 = smul.u32 2, %s27
          %s242 = ssub.s32 128, 128
          %243 = vsyncadd %s236, %s242
          %s244 = smul.addr %s26, 4
          %s245 = sadd.s32 %s240, %s244
          %s246 = smul.addr %s245, 64
          %s247 = scalar_lea.hbm %s0, %s246
          %s248 = sshll.u32 %s239, 4
          %s249 = int_to_ptr.vmem [resolvable:$true] %s248
          %254 = dma.hbm_to_vmem [thread:$0]  %s247, 128, %s249, %s236, 64, 64, 4
        $region36: #{tpu_custom_call.1} parent=31 // pred_fallthru
          _
      $region32: #{tpu_custom_call.1} parent=5 // pred_fallthru
        _
      %p255 = scmp.le.s32.totalorder 1, %s19
      %p256 = scmp.lt.s32.totalorder %s19, 5
      %p257 = pnand %p255, %p256
      %p258 = pneg %p257
      // Predicated region
      $region37: #{tpu_custom_call.1} parent=5 // pred_check
        _
      $region38: #{tpu_custom_call.1} parent=5 // pred_check_branch
        %260 = sbr.rel (%p257) target = $region40
      $region39: #{tpu_custom_call.1} parent=5 // pred_region
        %s261 = ssub.s32 %s19, 1
        %s262 = sand.u32 %s46, 1
        %s263 = scalar_lea.sflag [#allocation5], %s262
        %s264 = sand.u32 %s46, 1
        %s265 = smul.addr %s264, 8
        %s266 = scalar_lea.vmem [#allocation4], %s265
        // Predicated region
        $region41: #{tpu_custom_call.1} parent=39 // pred_check
          %p267 = pneg %p59
        $region42: #{tpu_custom_call.1} parent=39 // pred_check_branch
          %269 = sbr.rel (%p267) target = $region44
        $region43: #{tpu_custom_call.1} parent=39 // pred_region
          %270 = dma.done %s263, 128
        $region44: #{tpu_custom_call.1} parent=39 // pred_fallthru
          _
        // Predicated region
        $region45: #{tpu_custom_call.1} parent=39 // pred_check
          %p271 = pneg %p80
        $region46: #{tpu_custom_call.1} parent=39 // pred_check_branch
          %273 = sbr.rel (%p271) target = $region48
        $region47: #{tpu_custom_call.1} parent=39 // pred_region
          %274 = dma.done [#allocation8], 3072
        $region48: #{tpu_custom_call.1} parent=39 // pred_fallthru
          _
        // Predicated region
        $region49: #{tpu_custom_call.1} parent=39 // pred_check
          %p275 = pneg %p101
        $region50: #{tpu_custom_call.1} parent=39 // pred_check_branch
          %277 = sbr.rel (%p275) target = $region52
        $region51: #{tpu_custom_call.1} parent=39 // pred_region
          %278 = dma.done [#allocation8], 2048
        $region52: #{tpu_custom_call.1} parent=39 // pred_fallthru
          _
        // Predicated region
        $region53: #{tpu_custom_call.1} parent=39 // pred_check
          %p279 = pneg %p143
        $region54: #{tpu_custom_call.1} parent=39 // pred_check_branch
          %281 = sbr.rel (%p279) target = $region56
        $region55: #{tpu_custom_call.1} parent=39 // pred_region
          %282 = dma.done [#allocation11], 512
        $region56: #{tpu_custom_call.1} parent=39 // pred_fallthru
          _
        %s283 = sand.u32 %s46, 1
        %s284 = scalar_lea.sflag [#allocation5], %s283
        %s285 = sand.u32 %s46, 1
        %s286 = smul.addr %s285, 8
        %s287 = scalar_lea.vmem [#allocation4], %s286
        %p288 = pneg %p59
        %p289 = pneg %p56
        %p290 = pneg %p80
        %p291 = pneg %p77
        %p292 = pneg %p101
        %p293 = pneg %p98
        %p294 = pneg %p122
        %p295 = pneg %p119
        %p296 = pneg %p143
        %p297 = pneg %p140
        %p298 = pneg %p171
        %p299 = pneg %p168
        %s300 = sand.u32 %s158, 1
        %s301 = scalar_lea.sflag [#allocation6], %s300
        %s302 = sand.u32 %s158, 1
        %s303 = smul.addr %s302, 8
        %s304 = scalar_lea.vmem [#allocation12], %s303
        %s305 = smul.u32 2, %s29
        %s306 = smul.u32 2, %s29
        %v308 = vld [vmem:[%s266] sm:$0xf]
        %v309 = vld [vmem:[%s266 + $0x4] sm:$0xf]
        %v310 = vld [vmem:[#allocation7] sm:$0xff]
        %v311 = vld [vmem:[#allocation7 + $0x8] sm:$0xf]
        %v312 = vld [vmem:[#allocation7 + $0xc] sm:$0xff]
        %v313 = vld [vmem:[#allocation7 + $0x14] sm:$0xf]
        %v314 = vld [vmem:[#allocation7 + $0x18] sm:$0xff]
        %v315 = vld [vmem:[#allocation7 + $0x20] sm:$0xf]
        %v316 = vld [vmem:[#allocation7 + $0x24] sm:$0xff]
        %v317 = vld [vmem:[#allocation7 + $0x2c] sm:$0xf]
        %v318 = vld [vmem:[#allocation7 + $0x30] sm:$0xff]
        %v319 = vld [vmem:[#allocation7 + $0x38] sm:$0xf]
        %v320 = vld [vmem:[#allocation7 + $0x3c] sm:$0xff]
        %v321 = vld [vmem:[#allocation7 + $0x44] sm:$0xf]
        %v322 = vld [vmem:[#allocation7 + $0x48] sm:$0xff]
        %v323 = vld [vmem:[#allocation7 + $0x50] sm:$0xf]
        %v324 = vld [vmem:[#allocation7 + $0x54] sm:$0xff]
        %v325 = vld [vmem:[#allocation7 + $0x5c] sm:$0xf]
        %v326 = vld [vmem:[#allocation7 + $0x60] sm:$0xff]
        %v327 = vld [vmem:[#allocation7 + $0x68] sm:$0xf]
        %v328 = vld [vmem:[#allocation7 + $0x6c] sm:$0xff]
        %v329 = vld [vmem:[#allocation7 + $0x74] sm:$0xf]
        %v330 = vld [vmem:[#allocation7 + $0x78] sm:$0xff]
        %v331 = vld [vmem:[#allocation7 + $0x80] sm:$0xf]
        %v332 = vld [vmem:[#allocation7 + $0x84] sm:$0xff]
        %v333 = vld [vmem:[#allocation7 + $0x8c] sm:$0xf]
        %v334 = vld [vmem:[#allocation7 + $0x90] sm:$0xff]
        %v335 = vld [vmem:[#allocation7 + $0x98] sm:$0xf]
        %v336 = vld [vmem:[#allocation7 + $0x9c] sm:$0xff]
        %v337 = vld [vmem:[#allocation7 + $0xa4] sm:$0xf]
        %v338 = vld [vmem:[#allocation7 + $0xa8] sm:$0xff]
        %v339 = vld [vmem:[#allocation7 + $0xb0] sm:$0xf]
        %v340 = vld [vmem:[#allocation7 + $0xb4] sm:$0xff]
        %v341 = vld [vmem:[#allocation7 + $0xbc] sm:$0xf]
        %v344 = vunpack.c.l.b16 %v308
        %v345 = vunpack.c.l.b16 %v309
        %v346 = vpack.c.b16 %v345, %v344
        %v380 = vunpack.c.l.b16 %v310
        %v381 = vunpack.c.h.b16 %v310
        %v382 = vunpack.c.l.b16 %v311
        %v383 = vunpack.c.l.b16 %v312
        %v384 = vunpack.c.h.b16 %v312
        %v385 = vunpack.c.l.b16 %v313
        %v386 = vunpack.c.l.b16 %v314
        %v387 = vunpack.c.h.b16 %v314
        %v388 = vunpack.c.l.b16 %v315
        %v389 = vunpack.c.l.b16 %v316
        %v390 = vunpack.c.h.b16 %v316
        %v391 = vunpack.c.l.b16 %v317
        %v392 = vunpack.c.l.b16 %v318
        %v393 = vunpack.c.h.b16 %v318
        %v394 = vunpack.c.l.b16 %v319
        %v395 = vunpack.c.l.b16 %v320
        %v396 = vunpack.c.h.b16 %v320
        %v397 = vunpack.c.l.b16 %v321
        %v398 = vunpack.c.l.b16 %v322
        %v399 = vunpack.c.h.b16 %v322
        %v400 = vunpack.c.l.b16 %v323
        %v401 = vunpack.c.l.b16 %v324
        %v402 = vunpack.c.h.b16 %v324
        %v403 = vunpack.c.l.b16 %v325
        %v404 = vunpack.c.l.b16 %v326
        %v405 = vunpack.c.h.b16 %v326
        %v406 = vunpack.c.l.b16 %v327
        %v407 = vunpack.c.l.b16 %v328
        %v408 = vunpack.c.h.b16 %v328
        %v409 = vunpack.c.l.b16 %v329
        %v410 = vunpack.c.l.b16 %v330
        %v411 = vunpack.c.h.b16 %v330
        %v412 = vunpack.c.l.b16 %v331
        %v413 = vunpack.c.l.b16 %v332
        %v414 = vunpack.c.h.b16 %v332
        %v415 = vunpack.c.l.b16 %v333
        %v416 = vunpack.c.l.b16 %v334
        %v417 = vunpack.c.h.b16 %v334
        %v418 = vunpack.c.l.b16 %v335
        %v419 = vunpack.c.l.b16 %v336
        %v420 = vunpack.c.h.b16 %v336
        %v421 = vunpack.c.l.b16 %v337
        %v422 = vunpack.c.l.b16 %v338
        %v423 = vunpack.c.h.b16 %v338
        %v424 = vunpack.c.l.b16 %v339
        %v425 = vunpack.c.l.b16 %v340
        %v426 = vunpack.c.h.b16 %v340
        %v427 = vunpack.c.l.b16 %v341
        %v428 = vpack.c.b16 %v383, %v380
        %v429 = vpack.c.b16 %v384, %v381
        %v430 = vpack.c.b16 %v385, %v382
        %v431 = vpack.c.b16 %v389, %v386
        %v432 = vpack.c.b16 %v390, %v387
        %v433 = vpack.c.b16 %v391, %v388
        %v434 = vpack.c.b16 %v395, %v392
        %v435 = vpack.c.b16 %v396, %v393
        %v436 = vpack.c.b16 %v397, %v394
        %v437 = vpack.c.b16 %v401, %v398
        %v438 = vpack.c.b16 %v402, %v399
        %v439 = vpack.c.b16 %v403, %v400
        %v440 = vpack.c.b16 %v407, %v404
        %v441 = vpack.c.b16 %v408, %v405
        %v442 = vpack.c.b16 %v409, %v406
        %v443 = vpack.c.b16 %v413, %v410
        %v444 = vpack.c.b16 %v414, %v411
        %v445 = vpack.c.b16 %v415, %v412
        %v446 = vpack.c.b16 %v419, %v416
        %v447 = vpack.c.b16 %v420, %v417
        %v448 = vpack.c.b16 %v421, %v418
        %v449 = vpack.c.b16 %v425, %v422
        %v450 = vpack.c.b16 %v426, %v423
        %v451 = vpack.c.b16 %v427, %v424
        %476 = vmatprep.subr.bf16.mxu0 %v429
        %477 = vmatpush1.bf16.msra.mxu0 %v428
        %478 = vmatprep.subr.bf16.mxu0 %v432
        %479 = vmatpush1.bf16.msra.mxu0 %v431
        %480 = vmatprep.subr.bf16.mxu0 %v435
        %481 = vmatpush1.bf16.msra.mxu0 %v434
        %482 = vmatprep.subr.bf16.mxu0 %v438
        %483 = vmatpush1.bf16.msra.mxu0 %v437
        %484 = vmatprep.subr.bf16.mxu0 %v441
        %485 = vmatpush1.bf16.msra.mxu0 %v440
        %486 = vmatprep.subr.bf16.mxu0 %v444
        %487 = vmatpush1.bf16.msra.mxu0 %v443
        %488 = vmatprep.subr.bf16.mxu0 %v447
        %489 = vmatpush1.bf16.msra.mxu0 %v446
        %490 = vmatprep.subr.bf16.mxu0 %v450
        %491 = vmatpush1.bf16.msra.mxu0 %v449
        %492 = vmatprep.subr.bf16.mxu0 0
        %493 = vmatpush1.bf16.msra.mxu0 0
        %494 = vmatprep.subr.bf16.mxu0 0
        %495 = vmatpush1.bf16.msra.mxu0 0
        %496 = vmatprep.subr.bf16.mxu0 0
        %497 = vmatpush1.bf16.msra.mxu0 0
        %498 = vmatprep.subr.bf16.mxu0 0
        %499 = vmatpush1.bf16.msra.mxu0 0
        %500 = vmatprep.subr.bf16.mxu0 0
        %501 = vmatpush1.bf16.msra.mxu0 0
        %502 = vmatprep.subr.bf16.mxu0 0
        %503 = vmatpush1.bf16.msra.mxu0 0
        %504 = vmatprep.subr.bf16.mxu0 0
        %505 = vmatpush1.bf16.msra.mxu0 0
        %506 = vmatprep.subr.bf16.mxu0 0
        %507 = vmatpush1.bf16.msra.mxu0 0
        %508 = vmatprep.mubr.bf16.mxu0 0
        %509 = vmatmul.mubr.bf16.gmra.mrb[0].mxu0 %v346
        %v510 = vpop.f32.mrb[0].mxu0
        %v511 = vadd.f32 0.0, %v510
        %v512 = vpop.f32.mrb[0].mxu0
        %v513 = vadd.f32 0.0, %v512
        %v514 = vpop.f32.mrb[0].mxu0
        %v515 = vadd.f32 0.0, %v514
        %v516 = vpop.f32.mrb[0].mxu0
        %v517 = vadd.f32 0.0, %v516
        %518 = vdwg.mxu0
        %519 = vmatprep.subr.bf16.mxu0 0
        %520 = vmatpush1.bf16.msra.mxu0 %v430
        %521 = vmatprep.subr.bf16.mxu0 0
        %522 = vmatpush1.bf16.msra.mxu0 %v433
        %523 = vmatprep.subr.bf16.mxu0 0
        %524 = vmatpush1.bf16.msra.mxu0 %v436
        %525 = vmatprep.subr.bf16.mxu0 0
        %526 = vmatpush1.bf16.msra.mxu0 %v439
        %527 = vmatprep.subr.bf16.mxu0 0
        %528 = vmatpush1.bf16.msra.mxu0 %v442
        %529 = vmatprep.subr.bf16.mxu0 0
        %530 = vmatpush1.bf16.msra.mxu0 %v445
        %531 = vmatprep.subr.bf16.mxu0 0
        %532 = vmatpush1.bf16.msra.mxu0 %v448
        %533 = vmatprep.subr.bf16.mxu0 0
        %534 = vmatpush1.bf16.msra.mxu0 %v451
        %535 = vmatprep.subr.bf16.mxu0 0
        %536 = vmatpush1.bf16.msra.mxu0 0
        %537 = vmatprep.subr.bf16.mxu0 0
        %538 = vmatpush1.bf16.msra.mxu0 0
        %539 = vmatprep.subr.bf16.mxu0 0
        %540 = vmatpush1.bf16.msra.mxu0 0
        %541 = vmatprep.subr.bf16.mxu0 0
        %542 = vmatpush1.bf16.msra.mxu0 0
        %543 = vmatprep.subr.bf16.mxu0 0
        %544 = vmatpush1.bf16.msra.mxu0 0
        %545 = vmatprep.subr.bf16.mxu0 0
        %546 = vmatpush1.bf16.msra.mxu0 0
        %547 = vmatprep.subr.bf16.mxu0 0
        %548 = vmatpush1.bf16.msra.mxu0 0
        %549 = vmatprep.subr.bf16.mxu0 0
        %550 = vmatpush1.bf16.msra.mxu0 0
        %551 = vmatprep.mubr.bf16.mxu0 0
        %552 = vmatmul.mubr.bf16.gmra.mrb[0].mxu0 %v346
        %v553 = vpop.f32.mrb[0].mxu0
        %v554 = vadd.f32 0.0, %v553
        %v555 = vpop.f32.mrb[0].mxu0
        %v556 = vpop.f32.mrb[0].mxu0
        %v557 = vadd.f32 0.0, %v556
        %v558 = vpop.f32.mrb[0].mxu0
        %559 = vdwg.mxu0
        %560 = vst [vmem:[#allocation2] sm:$0xff] %v511
        %561 = vst [vmem:[#allocation2 + $0x8] sm:$0xff] %v513
        %562 = vst [vmem:[#allocation2 + $0x10] sm:$0xff] %v554
        %563 = vst [vmem:[#allocation2 + $0x18] sm:$0xff] %v515
        %564 = vst [vmem:[#allocation2 + $0x20] sm:$0xff] %v517
        %565 = vst [vmem:[#allocation2 + $0x28] sm:$0xff] %v557
        %v566 = vld [vmem:[%s3] sm:$0x1]
        %v567 = vld [vmem:[%s3 + $0x4] sm:$0x1]
        %v568 = vld [vmem:[#allocation2] sm:$0xff]
        %v569 = vld [vmem:[#allocation2 + $0x18] sm:$0xff]
        %v570 = vld [vmem:[#allocation2 + $0x8] sm:$0xff]
        %v571 = vld [vmem:[#allocation2 + $0x20] sm:$0xff]
        %vm574 = vcmask 1040384
        %v575 = vrot.slane %v568, 7
        %v576 = vrot.slane %v569, 7
        %v577 = vsel %vm574, %v575, %v576
        %v580 = vsel %vm574, 0.0, %v575
        %v583 = vrot.slane %v570, 7
        %v584 = vrot.slane %v571, 7
        %v585 = vsel %vm574, %v583, %v584
        %v588 = vsel %vm574, 0.0, %v583
        %v589 = vlaneseq
        %v590 = vshrl.u32 %v589, 7
        %v591 = vsub.s32 0, %v590
        %v592 = vrot.slane %v566, %v591
        %v593 = vmul.f32 %v592, %v580
        %v594 = vmul.f32 %v592, %v577
        %v595 = vadd.f32 %v568, %v593
        %v596 = vadd.f32 %v569, %v594
        %v597 = vlaneseq
        %v598 = vshrl.u32 %v597, 7
        %v599 = vsub.s32 0, %v598
        %v600 = vrot.slane %v567, %v599
        %v601 = vmul.f32 %v600, %v588
        %v602 = vmul.f32 %v600, %v585
        %v603 = vsub.f32 %v595, %v601
        %v604 = vsub.f32 %v596, %v602
        %v605 = vmul.f32 %v592, %v588
        %v606 = vmul.f32 %v592, %v585
        %v607 = vadd.f32 %v570, %v605
        %v608 = vadd.f32 %v571, %v606
        %v609 = vmul.f32 %v600, %v580
        %v610 = vmul.f32 %v600, %v577
        %v611 = vadd.f32 %v607, %v609
        %v612 = vadd.f32 %v608, %v610
        %613 = vst [vmem:[#allocation2] sm:$0xff] %v603
        %614 = vst [vmem:[#allocation2 + $0x8] sm:$0xff] %v611
        %615 = vst [vmem:[#allocation2 + $0x18] sm:$0xff] %v604
        %616 = vst [vmem:[#allocation2 + $0x20] sm:$0xff] %v612
        %v617 = vld [vmem:[%s3 + $0x1] sm:$0x1]
        %v618 = vld [vmem:[%s3 + $0x5] sm:$0x1]
        %v619 = vld [vmem:[#allocation2] sm:$0xff]
        %v620 = vld [vmem:[#allocation2 + $0x18] sm:$0xff]
        %v621 = vld [vmem:[#allocation2 + $0x8] sm:$0xff]
        %v622 = vld [vmem:[#allocation2 + $0x20] sm:$0xff]
        %vm625 = vcmask 1041408
        %v626 = vrot.slane %v619, 6
        %v627 = vrot.slane %v620, 6
        %v628 = vsel %vm625, %v626, %v627
        %v631 = vsel %vm625, 0.0, %v626
        %v634 = vrot.slane %v621, 6
        %v635 = vrot.slane %v622, 6
        %v636 = vsel %vm625, %v634, %v635
        %v639 = vsel %vm625, 0.0, %v634
        %v640 = vlaneseq
        %v641 = vshrl.u32 %v640, 7
        %v642 = vsub.s32 0, %v641
        %v643 = vrot.slane %v617, %v642
        %v644 = vmul.f32 %v643, %v631
        %v645 = vmul.f32 %v643, %v628
        %v646 = vadd.f32 %v619, %v644
        %v647 = vadd.f32 %v620, %v645
        %v648 = vlaneseq
        %v649 = vshrl.u32 %v648, 7
        %v650 = vsub.s32 0, %v649
        %v651 = vrot.slane %v618, %v650
        %v652 = vmul.f32 %v651, %v639
        %v653 = vmul.f32 %v651, %v636
        %v654 = vsub.f32 %v646, %v652
        %v655 = vsub.f32 %v647, %v653
        %v656 = vmul.f32 %v643, %v639
        %v657 = vmul.f32 %v643, %v636
        %v658 = vadd.f32 %v621, %v656
        %v659 = vadd.f32 %v622, %v657
        %v660 = vmul.f32 %v651, %v631
        %v661 = vmul.f32 %v651, %v628
        %v662 = vadd.f32 %v658, %v660
        %v663 = vadd.f32 %v659, %v661
        %664 = vst [vmem:[#allocation2] sm:$0xff] %v654
        %665 = vst [vmem:[#allocation2 + $0x8] sm:$0xff] %v662
        %666 = vst [vmem:[#allocation2 + $0x18] sm:$0xff] %v655
        %667 = vst [vmem:[#allocation2 + $0x20] sm:$0xff] %v663
        %v668 = vld [vmem:[%s3 + $0x2] sm:$0x1]
        %v669 = vld [vmem:[%s3 + $0x6] sm:$0x1]
        %v670 = vld [vmem:[#allocation2] sm:$0xff]
        %v671 = vld [vmem:[#allocation2 + $0x18] sm:$0xff]
        %v672 = vld [vmem:[#allocation2 + $0x8] sm:$0xff]
        %v673 = vld [vmem:[#allocation2 + $0x20] sm:$0xff]
        %vm676 = vcmask 1043456
        %v677 = vrot.slane %v670, 4
        %v678 = vrot.slane %v671, 4
        %v679 = vsel %vm676, %v677, %v678
        %v682 = vsel %vm676, 0.0, %v677
        %v685 = vrot.slane %v672, 4
        %v686 = vrot.slane %v673, 4
        %v687 = vsel %vm676, %v685, %v686
        %v690 = vsel %vm676, 0.0, %v685
        %v691 = vlaneseq
        %v692 = vshrl.u32 %v691, 7
        %v693 = vsub.s32 0, %v692
        %v694 = vrot.slane %v668, %v693
        %v695 = vmul.f32 %v694, %v682
        %v696 = vmul.f32 %v694, %v679
        %v697 = vadd.f32 %v670, %v695
        %v698 = vadd.f32 %v671, %v696
        %v699 = vlaneseq
        %v700 = vshrl.u32 %v699, 7
        %v701 = vsub.s32 0, %v700
        %v702 = vrot.slane %v669, %v701
        %v703 = vmul.f32 %v702, %v690
        %v704 = vmul.f32 %v702, %v687
        %v705 = vsub.f32 %v697, %v703
        %v706 = vsub.f32 %v698, %v704
        %v707 = vmul.f32 %v694, %v690
        %v708 = vmul.f32 %v694, %v687
        %v709 = vadd.f32 %v672, %v707
        %v710 = vadd.f32 %v673, %v708
        %v711 = vmul.f32 %v702, %v682
        %v712 = vmul.f32 %v702, %v679
        %v713 = vadd.f32 %v709, %v711
        %v714 = vadd.f32 %v710, %v712
        %715 = vst [vmem:[#allocation2] sm:$0xff] %v705
        %716 = vst [vmem:[#allocation2 + $0x8] sm:$0xff] %v713
        %717 = vst [vmem:[#allocation2 + $0x18] sm:$0xff] %v706
        %718 = vst [vmem:[#allocation2 + $0x20] sm:$0xff] %v714
        %v719 = vld [vmem:[%s3 + $0x3] sm:$0x1]
        %v720 = vld [vmem:[%s3 + $0x7] sm:$0x1]
        %v721 = vld [vmem:[#allocation2] sm:$0xff]
        %v722 = vld [vmem:[#allocation2 + $0x8] sm:$0xff]
        %v723 = vld [vmem:[#allocation2 + $0x18] sm:$0xff]
        %v724 = vld [vmem:[#allocation2 + $0x20] sm:$0xff]
        %v725 = vlaneseq
        %v726 = vshrl.u32 %v725, 7
        %v727 = vsub.s32 0, %v726
        %v728 = vrot.slane %v719, %v727
        %v729 = vmul.f32 %v728, %v721
        %v730 = vadd.f32 %v723, %v729
        %v731 = vlaneseq
        %v732 = vshrl.u32 %v731, 7
        %v733 = vsub.s32 0, %v732
        %v734 = vrot.slane %v720, %v733
        %v735 = vmul.f32 %v734, %v722
        %v736 = vsub.f32 %v730, %v735
        %v737 = vmul.f32 %v728, %v722
        %v738 = vadd.f32 %v724, %v737
        %v739 = vmul.f32 %v734, %v721
        %v740 = vadd.f32 %v738, %v739
        %741 = vst [vmem:[#allocation2 + $0x18] sm:$0xff] %v736
        %742 = vst [vmem:[#allocation2 + $0x20] sm:$0xff] %v740
        %p743 = scmp.gt.s32.totalorder %s29, 0
        // Predicated region
        $region57: #{tpu_custom_call.1} parent=39 // pred_check
          %p744 = pneg %p743
        $region58: #{tpu_custom_call.1} parent=39 // pred_check_branch
          %746 = sbr.rel (%p744) target = $region60
        $region59: #{tpu_custom_call.1} parent=39 // pred_region
          %v747 = vld [vmem:[#allocation3] sm:$0x1]
          %v748 = vld [vmem:[#allocation3 + $0x1] sm:$0x1]
          %v749 = vld [vmem:[#allocation10] sm:$0xff]
          %v750 = vld [vmem:[#allocation10 + $0x10] sm:$0xff]
          %v751 = vld [vmem:[#allocation10 + $0x8] sm:$0xff]
          %v752 = vld [vmem:[#allocation10 + $0x18] sm:$0xff]
          %v753 = vld [vmem:[#allocation2] sm:$0xff]
          %v754 = vld [vmem:[#allocation2 + $0x18] sm:$0xff]
          %v755 = vld [vmem:[#allocation2 + $0x8] sm:$0xff]
          %v756 = vld [vmem:[#allocation2 + $0x20] sm:$0xff]
          %v758 = vlaneseq
          %v759 = vshrl.u32 %v758, 7
          %v760 = vsub.s32 0, %v759
          %v761 = vrot.slane %v747, %v760
          %v763 = vmul.f32 %v749, %v761
          %v764 = vmul.f32 %v750, %v761
          %v765 = vadd.f32 %v753, %v763
          %v766 = vadd.f32 %v754, %v764
          %v768 = vlaneseq
          %v769 = vshrl.u32 %v768, 7
          %v770 = vsub.s32 0, %v769
          %v771 = vrot.slane %v748, %v770
          %v773 = vmul.f32 %v751, %v771
          %v774 = vmul.f32 %v752, %v771
          %v775 = vsub.f32 %v765, %v773
          %v776 = vsub.f32 %v766, %v774
          %v777 = vmul.f32 %v751, %v761
          %v778 = vmul.f32 %v752, %v761
          %v779 = vadd.f32 %v755, %v777
          %v780 = vadd.f32 %v756, %v778
          %v781 = vmul.f32 %v749, %v771
          %v782 = vmul.f32 %v750, %v771
          %v783 = vadd.f32 %v779, %v781
          %v784 = vadd.f32 %v780, %v782
          %785 = vst [vmem:[#allocation2] sm:$0xff] %v775
          %786 = vst [vmem:[#allocation2 + $0x8] sm:$0xff] %v783
          %787 = vst [vmem:[#allocation2 + $0x18] sm:$0xff] %v776
          %788 = vst [vmem:[#allocation2 + $0x20] sm:$0xff] %v784
        $region60: #{tpu_custom_call.1} parent=39 // pred_fallthru
          _
        %s789 = scalar_lea.vmem [#allocation2], 31
        %v790 = vld [vmem:[%s789] ss:$8 sm:$0x3]
        %v791 = vlaneseq
        %vm792 = vcmp.ge.s32.totalorder %v791, 0
        %vm793 = vcmp.lt.s32.totalorder %v791, 256
        %vm794 = vmand %vm792, %vm793
        %795 = vst.msk [vmem:[#allocation3] sm:$0x3] %vm794, %v790
        %v796 = vld [vmem:[#allocation2] sm:$0xff]
        %v797 = vld [vmem:[#allocation2 + $0x8] sm:$0xff]
        %v798 = vld [vmem:[#allocation2 + $0x18] sm:$0xff]
        %v799 = vld [vmem:[#allocation2 + $0x20] sm:$0xff]
        %v800 = vpack.c.bf16 %v798, %v796
        %v801 = vpack.c.bf16 %v799, %v797
        %v802 = vld [vmem:[#allocation9] sm:$0xf]
        %v803 = vld [vmem:[#allocation9 + $0x4] sm:$0xf]
        %v804 = vld [vmem:[#allocation9 + $0x8] sm:$0xf]
        %v805 = vld [vmem:[#allocation9 + $0xc] sm:$0xf]
        %v806 = vld [vmem:[#allocation9 + $0x10] sm:$0xf]
        %v807 = vld [vmem:[#allocation9 + $0x14] sm:$0xf]
        %v808 = vld [vmem:[#allocation9 + $0x18] sm:$0xf]
        %v809 = vld [vmem:[#allocation9 + $0x1c] sm:$0xf]
        %v810 = vld [vmem:[#allocation9 + $0x20] sm:$0xf]
        %v811 = vld [vmem:[#allocation9 + $0x24] sm:$0xf]
        %v812 = vld [vmem:[#allocation9 + $0x28] sm:$0xf]
        %v813 = vld [vmem:[#allocation9 + $0x2c] sm:$0xf]
        %v814 = vld [vmem:[#allocation9 + $0x30] sm:$0xf]
        %v815 = vld [vmem:[#allocation9 + $0x34] sm:$0xf]
        %v816 = vld [vmem:[#allocation9 + $0x38] sm:$0xf]
        %v817 = vld [vmem:[#allocation9 + $0x3c] sm:$0xf]
        %v818 = vld [vmem:[#allocation9 + $0x40] sm:$0xf]
        %v819 = vld [vmem:[#allocation9 + $0x44] sm:$0xf]
        %v820 = vld [vmem:[#allocation9 + $0x48] sm:$0xf]
        %v821 = vld [vmem:[#allocation9 + $0x4c] sm:$0xf]
        %v822 = vld [vmem:[#allocation9 + $0x50] sm:$0xf]
        %v823 = vld [vmem:[#allocation9 + $0x54] sm:$0xf]
        %v824 = vld [vmem:[#allocation9 + $0x58] sm:$0xf]
        %v825 = vld [vmem:[#allocation9 + $0x5c] sm:$0xf]
        %v826 = vld [vmem:[#allocation9 + $0x60] sm:$0xf]
        %v827 = vld [vmem:[#allocation9 + $0x64] sm:$0xf]
        %v828 = vld [vmem:[#allocation9 + $0x68] sm:$0xf]
        %v829 = vld [vmem:[#allocation9 + $0x6c] sm:$0xf]
        %v830 = vld [vmem:[#allocation9 + $0x70] sm:$0xf]
        %v831 = vld [vmem:[#allocation9 + $0x74] sm:$0xf]
        %v832 = vld [vmem:[#allocation9 + $0x78] sm:$0xf]
        %v833 = vld [vmem:[#allocation9 + $0x7c] sm:$0xf]
        %v834 = vld [vmem:[#allocation2 + $0x10] sm:$0xff]
        %v835 = vld [vmem:[#allocation2 + $0x28] sm:$0xff]
        %v868 = vunpack.c.l.b16 %v802
        %v869 = vunpack.c.l.b16 %v803
        %v870 = vunpack.c.l.b16 %v804
        %v871 = vunpack.c.l.b16 %v805
        %v872 = vunpack.c.l.b16 %v806
        %v873 = vunpack.c.l.b16 %v807
        %v874 = vunpack.c.l.b16 %v808
        %v875 = vunpack.c.l.b16 %v809
        %v876 = vunpack.c.l.b16 %v810
        %v877 = vunpack.c.l.b16 %v811
        %v878 = vunpack.c.l.b16 %v812
        %v879 = vunpack.c.l.b16 %v813
        %v880 = vunpack.c.l.b16 %v814
        %v881 = vunpack.c.l.b16 %v815
        %v882 = vunpack.c.l.b16 %v816
        %v883 = vunpack.c.l.b16 %v817
        %v884 = vunpack.c.l.b16 %v818
        %v885 = vunpack.c.l.b16 %v819
        %v886 = vunpack.c.l.b16 %v820
        %v887 = vunpack.c.l.b16 %v821
        %v888 = vunpack.c.l.b16 %v822
        %v889 = vunpack.c.l.b16 %v823
        %v890 = vunpack.c.l.b16 %v824
        %v891 = vunpack.c.l.b16 %v825
        %v892 = vunpack.c.l.b16 %v826
        %v893 = vunpack.c.l.b16 %v827
        %v894 = vunpack.c.l.b16 %v828
        %v895 = vunpack.c.l.b16 %v829
        %v896 = vunpack.c.l.b16 %v830
        %v897 = vunpack.c.l.b16 %v831
        %v898 = vunpack.c.l.b16 %v832
        %v899 = vunpack.c.l.b16 %v833
        %v900 = vpack.c.b16 %v869, %v868
        %v901 = vpack.c.b16 %v871, %v870
        %v902 = vpack.c.b16 %v873, %v872
        %v903 = vpack.c.b16 %v875, %v874
        %v904 = vpack.c.b16 %v877, %v876
        %v905 = vpack.c.b16 %v879, %v878
        %v906 = vpack.c.b16 %v881, %v880
        %v907 = vpack.c.b16 %v883, %v882
        %v908 = vpack.c.b16 %v885, %v884
        %v909 = vpack.c.b16 %v887, %v886
        %v910 = vpack.c.b16 %v889, %v888
        %v911 = vpack.c.b16 %v891, %v890
        %v912 = vpack.c.b16 %v893, %v892
        %v913 = vpack.c.b16 %v895, %v894
        %v914 = vpack.c.b16 %v897, %v896
        %v915 = vpack.c.b16 %v899, %v898
        %932 = vmatprep.subr.bf16.mxu0 0
        %933 = vmatpush1.bf16.msra.mxu0 %v900
        %934 = vmatprep.subr.bf16.mxu0 0
        %935 = vmatpush1.bf16.msra.mxu0 %v901
        %936 = vmatprep.subr.bf16.mxu0 0
        %937 = vmatpush1.bf16.msra.mxu0 %v902
        %938 = vmatprep.subr.bf16.mxu0 0
        %939 = vmatpush1.bf16.msra.mxu0 %v903
        %940 = vmatprep.subr.bf16.mxu0 0
        %941 = vmatpush1.bf16.msra.mxu0 %v904
        %942 = vmatprep.subr.bf16.mxu0 0
        %943 = vmatpush1.bf16.msra.mxu0 %v905
        %944 = vmatprep.subr.bf16.mxu0 0
        %945 = vmatpush1.bf16.msra.mxu0 %v906
        %946 = vmatprep.subr.bf16.mxu0 0
        %947 = vmatpush1.bf16.msra.mxu0 %v907
        %948 = vmatprep.subr.bf16.mxu0 0
        %949 = vmatpush1.bf16.msra.mxu0 %v908
        %950 = vmatprep.subr.bf16.mxu0 0
        %951 = vmatpush1.bf16.msra.mxu0 %v909
        %952 = vmatprep.subr.bf16.mxu0 0
        %953 = vmatpush1.bf16.msra.mxu0 %v910
        %954 = vmatprep.subr.bf16.mxu0 0
        %955 = vmatpush1.bf16.msra.mxu0 %v911
        %956 = vmatprep.subr.bf16.mxu0 0
        %957 = vmatpush1.bf16.msra.mxu0 %v912
        %958 = vmatprep.subr.bf16.mxu0 0
        %959 = vmatpush1.bf16.msra.mxu0 %v913
        %960 = vmatprep.subr.bf16.mxu0 0
        %961 = vmatpush1.bf16.msra.mxu0 %v914
        %962 = vmatprep.subr.bf16.mxu0 0
        %963 = vmatpush1.bf16.msra.mxu0 %v915
        %964 = vmatprep.mubr.bf16.mxu0 %v801
        %965 = vmatmul.mubr.bf16.gmra.mrb[0].mxu0 %v800
        %v966 = vpop.f32.mrb[0].mxu0
        %v967 = vadd.f32 %v834, %v966
        %v968 = vpop.f32.mrb[0].mxu0
        %v969 = vpop.f32.mrb[0].mxu0
        %v970 = vadd.f32 %v835, %v969
        %v971 = vpop.f32.mrb[0].mxu0
        %972 = vdwg.mxu0
        %v973 = vpack.c.bf16 %v970, %v967
        %v975 = vunpack.c.l.b16 %v973
        %v976 = vunpack.c.h.b16 %v973
        %v977 = vpack.c.b16 %v975, %v975
        %v978 = vpack.c.b16 %v976, %v976
        %981 = vst [vmem:[%s304] sm:$0xf] %v977
        %982 = vst [vmem:[%s304 + $0x4] sm:$0xf] %v978
        %s983 = sand.u32 %s158, 1
        %s984 = scalar_lea.sflag [#allocation6], %s983
        %s985 = sand.u32 %s158, 1
        %s986 = smul.addr %s985, 8
        %s987 = scalar_lea.vmem [#allocation12], %s986
        // Predicated region
        $region61: #{tpu_custom_call.1} parent=39 // pred_check
          %p988 = pneg %p168
        $region62: #{tpu_custom_call.1} parent=39 // pred_check_branch
          %990 = sbr.rel (%p988) target = $region64
        $region63: #{tpu_custom_call.1} parent=39 // pred_region
          %s991 = smul.u32 2, %s29
          %s993 = ssub.s32 128, 128
          %994 = vsyncadd %s984, %s993
          %s995 = smul.addr %s28, 4
          %s996 = sadd.s32 %s991, %s995
          %s997 = smul.addr %s996, 64
          %s998 = scalar_lea.hbm %s5, %s997
          %s999 = sshll.u32 %s987, 4
          %s1000 = int_to_ptr.vmem [resolvable:$true] %s999
          %1005 = dma.vmem_to_hbm [thread:$0]  %s1000, 128, %s998, %s984, 64, 64, 4
        $region64: #{tpu_custom_call.1} parent=39 // pred_fallthru
          _
      $region40: #{tpu_custom_call.1} parent=5 // pred_fallthru
        _
      %p1006 = scmp.le.s32.totalorder 2, %s19
      // Predicated region
      $region65: #{tpu_custom_call.1} parent=5 // pred_check
        %p1007 = pneg %p1006
      $region66: #{tpu_custom_call.1} parent=5 // pred_check_branch
        %1009 = sbr.rel (%p1007) target = $region68
      $region67: #{tpu_custom_call.1} parent=5 // pred_region
        %s1010 = ssub.s32 %s19, 2
        // Predicated region
        $region69: #{tpu_custom_call.1} parent=67 // pred_check
          %p1011 = pneg %p174
        $region70: #{tpu_custom_call.1} parent=67 // pred_check_branch
          %1013 = sbr.rel (%p1011) target = $region72
        $region71: #{tpu_custom_call.1} parent=67 // pred_region
          %s1014 = sand.u32 %s159, 1
          %s1015 = scalar_lea.sflag [#allocation6], %s1014
          %s1016 = sand.u32 %s159, 1
          %s1017 = smul.addr %s1016, 8
          %s1018 = scalar_lea.vmem [#allocation12], %s1017
          %1019 = dma.done %s1015, 128
        $region72: #{tpu_custom_call.1} parent=67 // pred_fallthru
          _
      $region68: #{tpu_custom_call.1} parent=5 // pred_fallthru
        _
    $region6: #{tpu_custom_call.1} parent=1 // loop_footer
      %s23 = sadd.s32 1, %s19
    $region7: #{tpu_custom_call.1} parent=1 // loop_footer_branch
      %18 = sbr.rel target = $region3
    $region8: #{tpu_custom_call.1} parent=1 // loop_exit
      _
    %1020 = vsyncpa [#allocation5], 1
    %s1021 = scalar_lea.sflag [#allocation5], 1
    %1022 = vsyncpa %s1021, 1
    %1023 = vsyncpa [#allocation8], 1
    %1024 = vsyncpa [#allocation11], 1
    %1025 = vsyncpa [#allocation6], 1
    %s1026 = scalar_lea.sflag [#allocation6], 1
    %1027 = vsyncpa %s1026, 1

</llo_original>
